<compile_context>
chip_gen: v5e
topology: v5e:2x2
jax: 0.10.0
libtpu: 0.0.40
codegen_flags: <defaults>
</compile_context>

<pallas_src>
import functools

import jax
import jax.numpy as jnp
from jax import lax
from jax.experimental import pallas as pl
from jax.experimental.pallas import tpu as pltpu

MAT_DIFF_LOSS_SCALE = 0.001
_MAX_TB = 128  # batch-tile rows (bf16 trans tile: 0.5 MiB @ D=64; x2 double buffer)


def _get_loss_kernel(pred_ref, target_ref, trans_ref, out_ref, *, total_b, scale):
    i = pl.program_id(0)

    pred = pred_ref[...]       # (TB, C) f32 log-probabilities
    tgt = target_ref[...]      # (TB, 1) i32 labels
    trans = trans_ref[...]     # (TB, D, D) bf16 feature-transform matrices

    tb, c = pred.shape
    d = trans.shape[-1]

    # ---- NLL: pred[r, tgt[r]] via where-select (no 0 * -inf NaN hazard) ----
    col = lax.broadcasted_iota(jnp.int32, (tb, c), 1)
    sel = jnp.sum(jnp.where(col == tgt, pred, jnp.float32(0.0)),
                  axis=1, keepdims=True)                                  # (TB, 1)

    # ---- regularizer: ||T T^T - I||_F, explicit (G - I) for numerics ----
    gram = lax.dot_general(
        trans, trans,
        dimension_numbers=(((2,), (2,)), ((0,), (0,))),
        preferred_element_type=jnp.float32,
    )                                                                     # (TB, D, D) f32

    r = lax.broadcasted_iota(jnp.int32, (d, d), 0)
    cidx = lax.broadcasted_iota(jnp.int32, (d, d), 1)
    eye = jnp.where(r == cidx, jnp.float32(1.0), jnp.float32(0.0))        # (D, D)

    diff = gram - eye[None, :, :]
    frob2 = jnp.sum(jnp.sum(diff * diff, axis=2), axis=1, keepdims=True)  # (TB, 1)
    fro = jnp.sqrt(jnp.maximum(frob2, jnp.float32(0.0)))                  # (TB, 1)

    per_b = -sel + jnp.float32(scale) * fro                               # (TB, 1)

    # Mask padded rows of a ragged last tile (static check: skipped when divisible).
    # NOTE: must stay after per_b (garbage rows may be NaN/Inf) and before the sum.
    if total_b % tb != 0:
        rows = i * tb + lax.broadcasted_iota(jnp.int32, (tb, 1), 0)
        per_b = jnp.where(rows < total_b, per_b, jnp.float32(0.0))

    partial = jnp.sum(per_b, axis=0, keepdims=True)                       # (1, 1)
    # Lane-dense, unmasked store of this tile's partial sum into its own block.
    out_ref[...] = jnp.broadcast_to(partial, out_ref.shape)


def _pick_batch_tile(b):
    # Single full-dim tile for tiny batches; otherwise split into >=2 tiles so a
    # v7x megacore "parallel" grid axis has work for both TensorCores, rounded up
    # to the sublane multiple (8) and capped so VMEM fits every generation.
    if b <= 8:
        return b
    half = -(-b // 2)            # cdiv(b, 2)
    tb = -(-half // 8) * 8       # round up to multiple of 8
    return min(tb, _MAX_TB)


def get_loss_pallas(pred, target, trans_feat, mat_diff_loss_scale=MAT_DIFF_LOSS_SCALE):
    pred = pred.astype(jnp.float32)
    trans_bf16 = trans_feat.astype(jnp.bfloat16)   # MXU bf16 operands, f32 accumulation
    b, c = pred.shape
    d = trans_feat.shape[-1]

    tb = _pick_batch_tile(b)
    num_tiles = pl.cdiv(b, tb)
    target2d = target.reshape(b, 1).astype(jnp.int32)

    kernel = functools.partial(_get_loss_kernel, total_b=b,
                               scale=float(mat_diff_loss_scale))

    cost = pl.CostEstimate(
        flops=2 * b * d * d * d + 4 * b * d * d,
        transcendentals=0,
        bytes_accessed=b * d * d * 2 + b * c * 4 + b * 4 + 8 * 128 * num_tiles * 4,
    )

    out = pl.pallas_call(
        kernel,
        out_shape=jax.ShapeDtypeStruct((8, 128 * num_tiles), jnp.float32),
        grid=(num_tiles,),
        in_specs=[
            pl.BlockSpec((tb, c), lambda i: (i, 0)),
            pl.BlockSpec((tb, 1), lambda i: (i, 0)),
            pl.BlockSpec((tb, d, d), lambda i: (i, 0, 0)),
        ],
        out_specs=pl.BlockSpec((8, 128), lambda i: (0, i)),
        compiler_params=pltpu.CompilerParams(
            dimension_semantics=("parallel",),   # independent per-tile partials
            vmem_limit_bytes=32 << 20,           # explicit; safe on v5e/v6e/v7x
        ),
        cost_estimate=cost,
    )(pred, target2d, trans_bf16)

    partials = out[0, ::128]                     # one partial sum per batch tile
    return jnp.sum(partials) / jnp.float32(b)    # divide by the TRUE batch size


def get_loss_reference(pred, target, trans_feat,
                       mat_diff_loss_scale=MAT_DIFF_LOSS_SCALE):
    # Plain-JAX f32 reference mirroring the PyTorch module.
    b = pred.shape[0]
    d = trans_feat.shape[-1]
    nll = -jnp.mean(pred[jnp.arange(b), target])
    gram = jnp.einsum("bij,bkj->bik", trans_feat, trans_feat)
    diff = gram - jnp.eye(d)[None]
    mat_diff = jnp.mean(jnp.sqrt(jnp.sum(diff * diff, axis=(1, 2))))
    return nll + mat_diff * mat_diff_loss_scale


if __name__ == "__main__":
    key = jax.random.PRNGKey(0)

    # Small shapes consistent with the module (PointNet feature-transform dim = 64).
    B, C, D = 4, 16, 64
    k1, k2, k3 = jax.random.split(key, 3)
    pred = jax.nn.log_softmax(jax.random.normal(k1, (B, C), jnp.float32), axis=-1)
    target = jax.random.randint(k2, (B,), 0, C, dtype=jnp.int32)
    trans_feat = 0.1 * jax.random.normal(k3, (B, D, D), jnp.float32)

    loss = get_loss_pallas(pred, target, trans_feat)
    jax.block_until_ready(loss)
    ref = get_loss_reference(pred, target, trans_feat)
    # bf16 gram operands contribute ~<0.5% rel error on a term scaled by 0.001.
    assert jnp.allclose(loss, ref, atol=1e-3, rtol=1e-3), (loss, ref)

    # Multi-tile + ragged-last-tile path (exercises batch tiling, pipelining, row mask,
    # and the >=2-tile split for v7x megacore).
    B2 = 200
    k4, k5, k6 = jax.random.split(jax.random.PRNGKey(1), 3)
    pred2 = jax.nn.log_softmax(jax.random.normal(k4, (B2, C), jnp.float32), axis=-1)
    target2 = jax.random.randint(k5, (B2,), 0, C, dtype=jnp.int32)
    trans2 = 0.1 * jax.random.normal(k6, (B2, D, D), jnp.float32)

    loss2 = get_loss_pallas(pred2, target2, trans2)
    jax.block_until_ready(loss2)
    ref2 = get_loss_reference(pred2, target2, trans2)
    assert jnp.allclose(loss2, ref2, atol=1e-3, rtol=1e-3), (loss2, ref2)

    print("KERNEL_OK")
</pallas_src>

<mosaic_0001>
module attributes {stable_mosaic.version = 11 : i64} {
  func.func @_get_loss_kernel(%arg0: i32, %arg1: memref<4x16xf32, #tpu.memory_space<vmem>>, %arg2: memref<4x1xi32, #tpu.memory_space<vmem>>, %arg3: memref<4x64x64xbf16, #tpu.memory_space<vmem>>, %arg4: memref<8x128xf32, #tpu.memory_space<vmem>>) attributes {dimension_semantics = [#tpu.dimension_semantics<parallel>], iteration_bounds = array<i64: 1>, scalar_prefetch = 0 : i64, scratch_operands = 0 : i64, tpu.core_type = #tpu.core_type<tc>, window_params = [{transform_indices = @transform_0, window_bounds = array<i64: 4, 16>}, {transform_indices = @transform_1, window_bounds = array<i64: 4, 1>}, {transform_indices = @transform_2, window_bounds = array<i64: 4, 64, 64>}, {transform_indices = @transform_3, window_bounds = array<i64: 8, 128>}]} {
    %c0 = arith.constant 0 : index
    %c0_0 = arith.constant 0 : index
    %0 = vector.load %arg1[%c0, %c0_0] : memref<4x16xf32, #tpu.memory_space<vmem>>, vector<4x16xf32>
    %c0_1 = arith.constant 0 : index
    %c0_2 = arith.constant 0 : index
    %1 = vector.load %arg2[%c0_1, %c0_2] : memref<4x1xi32, #tpu.memory_space<vmem>>, vector<4x1xi32>
    %c0_3 = arith.constant 0 : index
    %c0_4 = arith.constant 0 : index
    %c0_5 = arith.constant 0 : index
    %2 = vector.load %arg3[%c0_3, %c0_4, %c0_5] : memref<4x64x64xbf16, #tpu.memory_space<vmem>>, vector<4x64x64xbf16>
    %3 = tpu.iota {dimensions = array<i32: 1>} : vector<4x16xi32>
    %4 = vector.broadcast %1 : vector<4x1xi32> to vector<4x16xi32>
    %5 = arith.cmpi eq, %3, %4 : vector<4x16xi32>
    %cst = arith.constant 0.000000e+00 : f32
    %6 = vector.broadcast %cst : f32 to vector<4x16xf32>
    %7 = arith.select %5, %0, %6 : vector<4x16xi1>, vector<4x16xf32>
    %cst_6 = arith.constant dense<0.000000e+00> : vector<4xf32>
    %8 = vector.multi_reduction <add>, %7, %cst_6 [1] : vector<4x16xf32> to vector<4xf32>
    %9 = vector.shape_cast %8 : vector<4xf32> to vector<4x1xf32>
    %cst_7 = arith.constant dense<0.000000e+00> : vector<4x64x64xf32>
    %10 = tpu.matmul %2, %2, %cst_7 {dimension_numbers = #tpu.dot_dimension_numbers<[2], [2], [1], [1], [0, 0, 0, 1, 1, 1], [0], [0]>} : vector<4x64x64xbf16>, vector<4x64x64xbf16>, vector<4x64x64xf32> -> vector<4x64x64xf32>
    %11 = tpu.iota {dimensions = array<i32: 0>} : vector<64x64xi32>
    %12 = tpu.iota {dimensions = array<i32: 1>} : vector<64x64xi32>
    %13 = arith.cmpi eq, %11, %12 : vector<64x64xi32>
    %cst_8 = arith.constant 1.000000e+00 : f32
    %cst_9 = arith.constant 0.000000e+00 : f32
    %14 = vector.broadcast %cst_8 : f32 to vector<64x64xf32>
    %15 = vector.broadcast %cst_9 : f32 to vector<64x64xf32>
    %16 = arith.select %13, %14, %15 : vector<64x64xi1>, vector<64x64xf32>
    %17 = vector.shape_cast %16 : vector<64x64xf32> to vector<1x64x64xf32>
    %18 = vector.broadcast %17 : vector<1x64x64xf32> to vector<4x64x64xf32>
    %19 = arith.subf %10, %18 : vector<4x64x64xf32>
    %20 = arith.mulf %19, %19 : vector<4x64x64xf32>
    %cst_10 = arith.constant dense<0.000000e+00> : vector<4x64xf32>
    %21 = vector.multi_reduction <add>, %20, %cst_10 [2] : vector<4x64x64xf32> to vector<4x64xf32>
    %cst_11 = arith.constant dense<0.000000e+00> : vector<4xf32>
    %22 = vector.multi_reduction <add>, %21, %cst_11 [1] : vector<4x64xf32> to vector<4xf32>
    %23 = vector.shape_cast %22 : vector<4xf32> to vector<4x1xf32>
    %cst_12 = arith.constant 0.000000e+00 : f32
    %24 = vector.broadcast %cst_12 : f32 to vector<4x1xf32>
    %25 = arith.maximumf %23, %24 : vector<4x1xf32>
    %26 = math.sqrt %25 : vector<4x1xf32>
    %cst_13 = arith.constant 0.000000e+00 : f32
    %27 = vector.broadcast %cst_13 : f32 to vector<4x1xf32>
    %28 = arith.subf %27, %9 : vector<4x1xf32>
    %cst_14 = arith.constant 1.000000e-03 : f32
    %29 = vector.broadcast %cst_14 : f32 to vector<4x1xf32>
    %30 = arith.mulf %29, %26 : vector<4x1xf32>
    %31 = arith.addf %28, %30 : vector<4x1xf32>
    %cst_15 = arith.constant dense<0.000000e+00> : vector<1xf32>
    %32 = vector.multi_reduction <add>, %31, %cst_15 [0] : vector<4x1xf32> to vector<1xf32>
    %33 = vector.shape_cast %32 : vector<1xf32> to vector<1x1xf32>
    %34 = vector.shape_cast %33 : vector<1x1xf32> to vector<1x1xf32>
    %35 = vector.broadcast %34 : vector<1x1xf32> to vector<8x128xf32>
    %c0_16 = arith.constant 0 : index
    %c0_17 = arith.constant 0 : index
    %36 = vector.load %arg4[%c0_16, %c0_17] : memref<8x128xf32, #tpu.memory_space<vmem>>, vector<8x128xf32>
    tpu.vector_store %arg4[%c0_16, %c0_17], %35 {strides = array<i32>} : memref<8x128xf32, #tpu.memory_space<vmem>>, vector<8x128xf32>,
    return
  }
  func.func @transform_0(%arg0: i32) -> (i32, i32) {
    %c0_i32 = arith.constant 0 : i32
    %c0_i32_0 = arith.constant 0 : i32
    return %arg0, %c0_i32 : i32, i32
  }
  func.func @transform_1(%arg0: i32) -> (i32, i32) {
    %c0_i32 = arith.constant 0 : i32
    %c0_i32_0 = arith.constant 0 : i32
    return %arg0, %c0_i32 : i32, i32
  }
  func.func @transform_2(%arg0: i32) -> (i32, i32, i32) {
    %c0_i32 = arith.constant 0 : i32
    %c0_i32_0 = arith.constant 0 : i32
    %c0_i32_1 = arith.constant 0 : i32
    return %arg0, %c0_i32, %c0_i32_0 : i32, i32, i32
  }
  func.func @transform_3(%arg0: i32) -> (i32, i32) {
    %c0_i32 = arith.constant 0 : i32
    %c0_i32_0 = arith.constant 0 : i32
    return %c0_i32, %arg0 : i32, i32
  }
}

</mosaic_0001>

<llo_original>
// kernel: tpu_custom_call.1
$region0: #{tpu_custom_call.1}
  #allocation0 [shape = 'u32[]', space=smem, size = 0x4, offset = 0x4, fixed_abs, tag = 'smem constant byte address 0x4 - core index']
  #allocation1 [shape = 'u32[72,128]{1,0:T(1,128)}', space=vmem, size = 0x9000, scoped, tag = 'internal scratch']
  %s0 = inlined_call_operand.vmem [shape: f32[4,16], index: 0, kind: input, shape index: {}]
  %s1 = inlined_call_operand.vmem [shape: s32[4,1], index: 1, kind: input, shape index: {}]
  %s2 = inlined_call_operand.hbm [shape: bf16[4,64,64], index: 2, kind: input, shape index: {}]
  %s3 = inlined_call_operand.hbm [shape: f32[8,128], index: 3, kind: output, shape index: {}]
  %s4 = sld [smem:[#allocation0]]
  $region26: #{tpu_custom_call.1} parent=0
    _
  %s6 = ssub.s32 1, %s4
  %s7 = scalar_select 0, %s6, %s4
  $region1: #{tpu_custom_call.1} parent=0
    #allocation2 [shape = 'u8[65536]{0}', space=vmem, size = 0x10000, scoped, tag = 'input window, operand 2, single buffered']
    #allocation3 [shape = 's32[1]{0}', space=sflag, size = 0x4, scoped, tag = 'scoped memory for tpu_custom_call.1']
    #allocation4 [shape = 's32[1]{0}', space=sflag, size = 0x4, scoped, tag = 'scoped memory for tpu_custom_call.1']
    #allocation5 [shape = 'u8[4096]{0}', space=vmem, size = 0x1000, scoped, tag = 'output window, operand 0, single buffered']
    %8 = vsyncpa [#allocation3], 0
    %9 = vsyncpa [#allocation4], 0
    // Predicated region
    $region2: #{tpu_custom_call.1} parent=1 // pred_check
      _
    $region3: #{tpu_custom_call.1} parent=1 // pred_check_branch
      %11 = sbr.rel (0) target = $region5
    $region4: #{tpu_custom_call.1} parent=1 // pred_region
      _
    $region5: #{tpu_custom_call.1} parent=1 // pred_fallthru
      _
    // Predicated region
    $region6: #{tpu_custom_call.1} parent=1 // pred_check
      _
    $region7: #{tpu_custom_call.1} parent=1 // pred_check_branch
      %13 = sbr.rel (0) target = $region9
    $region8: #{tpu_custom_call.1} parent=1 // pred_region
      _
    $region9: #{tpu_custom_call.1} parent=1 // pred_fallthru
      _
    // Predicated region
    $region10: #{tpu_custom_call.1} parent=1 // pred_check
      _
    $region11: #{tpu_custom_call.1} parent=1 // pred_check_branch
      %15 = sbr.rel (0) target = $region13
    $region12: #{tpu_custom_call.1} parent=1 // pred_region
      %17 = vsyncadd [#allocation3], 0
      %s18 = sshll.u32 %s2, 4
      %s19 = int_to_ptr.hbm [resolvable:$true] %s18
      %s20 = sshll.u32 [#allocation2], 4
      %s21 = int_to_ptr.vmem [resolvable:$true] %s20
      %26 = dma.hbm_to_vmem [thread:$0]  %s19, 2048, %s21, [#allocation3], 64, 64, 4
    $region13: #{tpu_custom_call.1} parent=1 // pred_fallthru
      _
    // Predicated region
    $region14: #{tpu_custom_call.1} parent=1 // pred_check
      _
    $region15: #{tpu_custom_call.1} parent=1 // pred_check_branch
      %28 = sbr.rel (0) target = $region17
    $region16: #{tpu_custom_call.1} parent=1 // pred_region
      %30 = dma.done [#allocation3], 2048
    $region17: #{tpu_custom_call.1} parent=1 // pred_fallthru
      _
    %v32 = vld [vmem:[%s0] sm:$0xf]
    %v33 = vld [vmem:[%s1] sm:$0xf]
    %v34 = vld [vmem:[#allocation2] sm:$0xf]
    %v35 = vld [vmem:[#allocation2 + $0x4] sm:$0xf]
    %v36 = vld [vmem:[#allocation2 + $0x8] sm:$0xf]
    %v37 = vld [vmem:[#allocation2 + $0xc] sm:$0xf]
    %v38 = vld [vmem:[#allocation2 + $0x10] sm:$0xf]
    %v39 = vld [vmem:[#allocation2 + $0x14] sm:$0xf]
    %v40 = vld [vmem:[#allocation2 + $0x18] sm:$0xf]
    %v41 = vld [vmem:[#allocation2 + $0x1c] sm:$0xf]
    %v42 = vld [vmem:[#allocation2 + $0x20] sm:$0xf]
    %v43 = vld [vmem:[#allocation2 + $0x24] sm:$0xf]
    %v44 = vld [vmem:[#allocation2 + $0x28] sm:$0xf]
    %v45 = vld [vmem:[#allocation2 + $0x2c] sm:$0xf]
    %v46 = vld [vmem:[#allocation2 + $0x30] sm:$0xf]
    %v47 = vld [vmem:[#allocation2 + $0x34] sm:$0xf]
    %v48 = vld [vmem:[#allocation2 + $0x38] sm:$0xf]
    %v49 = vld [vmem:[#allocation2 + $0x3c] sm:$0xf]
    %v50 = vld [vmem:[#allocation2 + $0x40] sm:$0xf]
    %v51 = vld [vmem:[#allocation2 + $0x44] sm:$0xf]
    %v52 = vld [vmem:[#allocation2 + $0x48] sm:$0xf]
    %v53 = vld [vmem:[#allocation2 + $0x4c] sm:$0xf]
    %v54 = vld [vmem:[#allocation2 + $0x50] sm:$0xf]
    %v55 = vld [vmem:[#allocation2 + $0x54] sm:$0xf]
    %v56 = vld [vmem:[#allocation2 + $0x58] sm:$0xf]
    %v57 = vld [vmem:[#allocation2 + $0x5c] sm:$0xf]
    %v58 = vld [vmem:[#allocation2 + $0x60] sm:$0xf]
    %v59 = vld [vmem:[#allocation2 + $0x64] sm:$0xf]
    %v60 = vld [vmem:[#allocation2 + $0x68] sm:$0xf]
    %v61 = vld [vmem:[#allocation2 + $0x6c] sm:$0xf]
    %v62 = vld [vmem:[#allocation2 + $0x70] sm:$0xf]
    %v63 = vld [vmem:[#allocation2 + $0x74] sm:$0xf]
    %v64 = vld [vmem:[#allocation2 + $0x78] sm:$0xf]
    %v65 = vld [vmem:[#allocation2 + $0x7c] sm:$0xf]
    %v66 = vlaneseq
    %v67 = vand.u32 %v66, 127
    %68 = vset.pattern.permute.xlu0 0
    %69 = vperm.xlu0 %68, %v33
    %v70 = vpop.permute.xlu0 %69
    %vm71 = vcmp.eq.s32.totalorder %v67, %v70
    %v72 = vsel %vm71, %v32, 0.0
    %vm73 = vcmask 125952
    %v74 = vsel %vm73, %v72, 0.0
    %75 = vadd.xlane.f32.xlu0 %v74
    %v76 = vpop.xlane.xlu0 %75
    %v85 = vunpack.c.l.b16 %v34
    %v86 = vunpack.c.l.b16 %v35
    %v87 = vunpack.c.l.b16 %v36
    %v88 = vunpack.c.l.b16 %v37
    %v89 = vunpack.c.l.b16 %v38
    %v90 = vunpack.c.l.b16 %v39
    %v91 = vunpack.c.l.b16 %v40
    %v92 = vunpack.c.l.b16 %v41
    %v93 = vpack.c.b16 %v86, %v85
    %v94 = vpack.c.b16 %v88, %v87
    %v95 = vpack.c.b16 %v90, %v89
    %v96 = vpack.c.b16 %v92, %v91
    %vm97 = vcmask 523264
    %v99 = vsel %vm97, %v93, 0
    %v102 = vsel %vm97, %v94, 0
    %v105 = vsel %vm97, %v95, 0
    %v108 = vsel %vm97, %v96, 0
    %110 = vmatpush.bf16.xpose.msra.mxu0 0
    %111 = vmatpush.bf16.xpose.msra.mxu0 0
    %112 = vmatpush.bf16.xpose.msra.mxu0 0
    %113 = vmatpush.bf16.xpose.msra.mxu0 0
    %114 = vmatpush.bf16.xpose.msra.mxu0 %v108
    %115 = vmatpush.bf16.xpose.msra.mxu0 %v105
    %116 = vmatpush.bf16.xpose.msra.mxu0 %v102
    %117 = vmatpush.bf16.xpose.msra.mxu0 %v99
    %118 = vmatmul.bf16.gmra.mxu0 %v99
    %v119 = vpop.f32.mrf.mxu0
    %v120 = vadd.f32 0.0, %v119
    %v121 = vpop.f32.mrf.mxu0
    %v122 = vadd.f32 0.0, %v121
    %123 = vmatmul.bf16.gmra.mxu0 %v102
    %v124 = vpop.f32.mrf.mxu0
    %v125 = vadd.f32 0.0, %v124
    %v126 = vpop.f32.mrf.mxu0
    %v127 = vadd.f32 0.0, %v126
    %128 = vmatmul.bf16.gmra.mxu0 %v105
    %v129 = vpop.f32.mrf.mxu0
    %v130 = vadd.f32 0.0, %v129
    %v131 = vpop.f32.mrf.mxu0
    %v132 = vadd.f32 0.0, %v131
    %133 = vmatmul.bf16.gmra.mxu0 %v108
    %v134 = vpop.f32.mrf.mxu0
    %v135 = vadd.f32 0.0, %v134
    %v136 = vpop.f32.mrf.mxu0
    %v137 = vadd.f32 0.0, %v136
    %138 = vdwg.mxu0
    %v147 = vunpack.c.l.b16 %v42
    %v148 = vunpack.c.l.b16 %v43
    %v149 = vunpack.c.l.b16 %v44
    %v150 = vunpack.c.l.b16 %v45
    %v151 = vunpack.c.l.b16 %v46
    %v152 = vunpack.c.l.b16 %v47
    %v153 = vunpack.c.l.b16 %v48
    %v154 = vunpack.c.l.b16 %v49
    %v155 = vpack.c.b16 %v148, %v147
    %v156 = vpack.c.b16 %v150, %v149
    %v157 = vpack.c.b16 %v152, %v151
    %v158 = vpack.c.b16 %v154, %v153
    %v160 = vsel %vm97, %v155, 0
    %v163 = vsel %vm97, %v156, 0
    %v166 = vsel %vm97, %v157, 0
    %v169 = vsel %vm97, %v158, 0
    %171 = vmatpush.bf16.xpose.msra.mxu0 0
    %172 = vmatpush.bf16.xpose.msra.mxu0 0
    %173 = vmatpush.bf16.xpose.msra.mxu0 0
    %174 = vmatpush.bf16.xpose.msra.mxu0 0
    %175 = vmatpush.bf16.xpose.msra.mxu0 %v169
    %176 = vmatpush.bf16.xpose.msra.mxu0 %v166
    %177 = vmatpush.bf16.xpose.msra.mxu0 %v163
    %178 = vmatpush.bf16.xpose.msra.mxu0 %v160
    %179 = vmatmul.bf16.gmra.mxu0 %v160
    %v180 = vpop.f32.mrf.mxu0
    %v181 = vadd.f32 0.0, %v180
    %v182 = vpop.f32.mrf.mxu0
    %v183 = vadd.f32 0.0, %v182
    %184 = vmatmul.bf16.gmra.mxu0 %v163
    %v185 = vpop.f32.mrf.mxu0
    %v186 = vadd.f32 0.0, %v185
    %v187 = vpop.f32.mrf.mxu0
    %v188 = vadd.f32 0.0, %v187
    %189 = vmatmul.bf16.gmra.mxu0 %v166
    %v190 = vpop.f32.mrf.mxu0
    %v191 = vadd.f32 0.0, %v190
    %v192 = vpop.f32.mrf.mxu0
    %v193 = vadd.f32 0.0, %v192
    %194 = vmatmul.bf16.gmra.mxu0 %v169
    %v195 = vpop.f32.mrf.mxu0
    %v196 = vadd.f32 0.0, %v195
    %v197 = vpop.f32.mrf.mxu0
    %v198 = vadd.f32 0.0, %v197
    %199 = vdwg.mxu0
    %v208 = vunpack.c.l.b16 %v50
    %v209 = vunpack.c.l.b16 %v51
    %v210 = vunpack.c.l.b16 %v52
    %v211 = vunpack.c.l.b16 %v53
    %v212 = vunpack.c.l.b16 %v54
    %v213 = vunpack.c.l.b16 %v55
    %v214 = vunpack.c.l.b16 %v56
    %v215 = vunpack.c.l.b16 %v57
    %v216 = vpack.c.b16 %v209, %v208
    %v217 = vpack.c.b16 %v211, %v210
    %v218 = vpack.c.b16 %v213, %v212
    %v219 = vpack.c.b16 %v215, %v214
    %v221 = vsel %vm97, %v216, 0
    %v224 = vsel %vm97, %v217, 0
    %v227 = vsel %vm97, %v218, 0
    %v230 = vsel %vm97, %v219, 0
    %232 = vmatpush.bf16.xpose.msra.mxu0 0
    %233 = vmatpush.bf16.xpose.msra.mxu0 0
    %234 = vmatpush.bf16.xpose.msra.mxu0 0
    %235 = vmatpush.bf16.xpose.msra.mxu0 0
    %236 = vmatpush.bf16.xpose.msra.mxu0 %v230
    %237 = vmatpush.bf16.xpose.msra.mxu0 %v227
    %238 = vmatpush.bf16.xpose.msra.mxu0 %v224
    %239 = vmatpush.bf16.xpose.msra.mxu0 %v221
    %240 = vmatmul.bf16.gmra.mxu0 %v221
    %v241 = vpop.f32.mrf.mxu0
    %v242 = vadd.f32 0.0, %v241
    %v243 = vpop.f32.mrf.mxu0
    %v244 = vadd.f32 0.0, %v243
    %245 = vmatmul.bf16.gmra.mxu0 %v224
    %v246 = vpop.f32.mrf.mxu0
    %v247 = vadd.f32 0.0, %v246
    %v248 = vpop.f32.mrf.mxu0
    %v249 = vadd.f32 0.0, %v248
    %250 = vmatmul.bf16.gmra.mxu0 %v227
    %v251 = vpop.f32.mrf.mxu0
    %v252 = vadd.f32 0.0, %v251
    %v253 = vpop.f32.mrf.mxu0
    %v254 = vadd.f32 0.0, %v253
    %255 = vmatmul.bf16.gmra.mxu0 %v230
    %v256 = vpop.f32.mrf.mxu0
    %v257 = vadd.f32 0.0, %v256
    %v258 = vpop.f32.mrf.mxu0
    %v259 = vadd.f32 0.0, %v258
    %260 = vdwg.mxu0
    %v269 = vunpack.c.l.b16 %v58
    %v270 = vunpack.c.l.b16 %v59
    %v271 = vunpack.c.l.b16 %v60
    %v272 = vunpack.c.l.b16 %v61
    %v273 = vunpack.c.l.b16 %v62
    %v274 = vunpack.c.l.b16 %v63
    %v275 = vunpack.c.l.b16 %v64
    %v276 = vunpack.c.l.b16 %v65
    %v277 = vpack.c.b16 %v270, %v269
    %v278 = vpack.c.b16 %v272, %v271
    %v279 = vpack.c.b16 %v274, %v273
    %v280 = vpack.c.b16 %v276, %v275
    %v282 = vsel %vm97, %v277, 0
    %v285 = vsel %vm97, %v278, 0
    %v288 = vsel %vm97, %v279, 0
    %v291 = vsel %vm97, %v280, 0
    %293 = vmatpush.bf16.xpose.msra.mxu0 0
    %294 = vmatpush.bf16.xpose.msra.mxu0 0
    %295 = vmatpush.bf16.xpose.msra.mxu0 0
    %296 = vmatpush.bf16.xpose.msra.mxu0 0
    %297 = vmatpush.bf16.xpose.msra.mxu0 %v291
    %298 = vmatpush.bf16.xpose.msra.mxu0 %v288
    %299 = vmatpush.bf16.xpose.msra.mxu0 %v285
    %300 = vmatpush.bf16.xpose.msra.mxu0 %v282
    %301 = vmatmul.bf16.gmra.mxu0 %v282
    %v302 = vpop.f32.mrf.mxu0
    %v303 = vadd.f32 0.0, %v302
    %v304 = vpop.f32.mrf.mxu0
    %v305 = vadd.f32 0.0, %v304
    %306 = vmatmul.bf16.gmra.mxu0 %v285
    %v307 = vpop.f32.mrf.mxu0
    %v308 = vadd.f32 0.0, %v307
    %v309 = vpop.f32.mrf.mxu0
    %v310 = vadd.f32 0.0, %v309
    %311 = vmatmul.bf16.gmra.mxu0 %v288
    %v312 = vpop.f32.mrf.mxu0
    %v313 = vadd.f32 0.0, %v312
    %v314 = vpop.f32.mrf.mxu0
    %v315 = vadd.f32 0.0, %v314
    %316 = vmatmul.bf16.gmra.mxu0 %v291
    %v317 = vpop.f32.mrf.mxu0
    %v318 = vadd.f32 0.0, %v317
    %v319 = vpop.f32.mrf.mxu0
    %v320 = vadd.f32 0.0, %v319
    %321 = vdwg.mxu0
    %v322 = vlaneseq
    %v323 = vshrl.u32 %v322, 7
    %v324 = vadd.s32 %v323, 8
    %v325 = vadd.s32 %v323, 16
    %v326 = vadd.s32 %v323, 24
    %v327 = vadd.s32 %v323, 32
    %v328 = vadd.s32 %v323, 40
    %v329 = vadd.s32 %v323, 48
    %v330 = vadd.s32 %v323, 56
    %vm331 = vcmp.eq.s32.totalorder %v323, %v67
    %vm332 = vcmp.eq.s32.totalorder %v324, %v67
    %vm333 = vcmp.eq.s32.totalorder %v325, %v67
    %vm334 = vcmp.eq.s32.totalorder %v326, %v67
    %vm335 = vcmp.eq.s32.totalorder %v327, %v67
    %vm336 = vcmp.eq.s32.totalorder %v328, %v67
    %vm337 = vcmp.eq.s32.totalorder %v329, %v67
    %vm338 = vcmp.eq.s32.totalorder %v330, %v67
    %v339 = vsel %vm331, 1.0, 0.0
    %v340 = vsel %vm332, 1.0, 0.0
    %v341 = vsel %vm333, 1.0, 0.0
    %v342 = vsel %vm334, 1.0, 0.0
    %v343 = vsel %vm335, 1.0, 0.0
    %v344 = vsel %vm336, 1.0, 0.0
    %v345 = vsel %vm337, 1.0, 0.0
    %v346 = vsel %vm338, 1.0, 0.0
    %v347 = vsub.f32 %v120, %v339
    %v348 = vsub.f32 %v122, %v340
    %v349 = vsub.f32 %v125, %v341
    %v350 = vsub.f32 %v127, %v342
    %v351 = vsub.f32 %v130, %v343
    %v352 = vsub.f32 %v132, %v344
    %v353 = vsub.f32 %v135, %v345
    %v354 = vsub.f32 %v137, %v346
    %v355 = vsub.f32 %v181, %v339
    %v356 = vsub.f32 %v183, %v340
    %v357 = vsub.f32 %v186, %v341
    %v358 = vsub.f32 %v188, %v342
    %v359 = vsub.f32 %v191, %v343
    %v360 = vsub.f32 %v193, %v344
    %v361 = vsub.f32 %v196, %v345
    %v362 = vsub.f32 %v198, %v346
    %v363 = vsub.f32 %v242, %v339
    %v364 = vsub.f32 %v244, %v340
    %v365 = vsub.f32 %v247, %v341
    %v366 = vsub.f32 %v249, %v342
    %v367 = vsub.f32 %v252, %v343
    %v368 = vsub.f32 %v254, %v344
    %v369 = vsub.f32 %v257, %v345
    %v370 = vsub.f32 %v259, %v346
    %v371 = vsub.f32 %v303, %v339
    %v372 = vsub.f32 %v305, %v340
    %v373 = vsub.f32 %v308, %v341
    %v374 = vsub.f32 %v310, %v342
    %v375 = vsub.f32 %v313, %v343
    %v376 = vsub.f32 %v315, %v344
    %v377 = vsub.f32 %v318, %v345
    %v378 = vsub.f32 %v320, %v346
    %v379 = vmul.f32 %v347, %v347
    %v380 = vmul.f32 %v348, %v348
    %v381 = vmul.f32 %v349, %v349
    %v382 = vmul.f32 %v350, %v350
    %v383 = vmul.f32 %v351, %v351
    %v384 = vmul.f32 %v352, %v352
    %v385 = vmul.f32 %v353, %v353
    %v386 = vmul.f32 %v354, %v354
    %v387 = vmul.f32 %v355, %v355
    %v388 = vmul.f32 %v356, %v356
    %v389 = vmul.f32 %v357, %v357
    %v390 = vmul.f32 %v358, %v358
    %v391 = vmul.f32 %v359, %v359
    %v392 = vmul.f32 %v360, %v360
    %v393 = vmul.f32 %v361, %v361
    %v394 = vmul.f32 %v362, %v362
    %v395 = vmul.f32 %v363, %v363
    %v396 = vmul.f32 %v364, %v364
    %v397 = vmul.f32 %v365, %v365
    %v398 = vmul.f32 %v366, %v366
    %v399 = vmul.f32 %v367, %v367
    %v400 = vmul.f32 %v368, %v368
    %v401 = vmul.f32 %v369, %v369
    %v402 = vmul.f32 %v370, %v370
    %v403 = vmul.f32 %v371, %v371
    %v404 = vmul.f32 %v372, %v372
    %v405 = vmul.f32 %v373, %v373
    %v406 = vmul.f32 %v374, %v374
    %v407 = vmul.f32 %v375, %v375
    %v408 = vmul.f32 %v376, %v376
    %v409 = vmul.f32 %v377, %v377
    %v410 = vmul.f32 %v378, %v378
    %v411 = vsel %vm97, %v379, 0.0
    %412 = vadd.xlane.f32.xlu0 %v411
    %v413 = vpop.xlane.xlu0 %412
    %v414 = vsel %vm97, %v380, 0.0
    %415 = vadd.xlane.f32.xlu0 %v414
    %v416 = vpop.xlane.xlu0 %415
    %v417 = vsel %vm97, %v381, 0.0
    %418 = vadd.xlane.f32.xlu0 %v417
    %v419 = vpop.xlane.xlu0 %418
    %v420 = vsel %vm97, %v382, 0.0
    %421 = vadd.xlane.f32.xlu0 %v420
    %v422 = vpop.xlane.xlu0 %421
    %v423 = vsel %vm97, %v383, 0.0
    %424 = vadd.xlane.f32.xlu0 %v423
    %v425 = vpop.xlane.xlu0 %424
    %v426 = vsel %vm97, %v384, 0.0
    %427 = vadd.xlane.f32.xlu0 %v426
    %v428 = vpop.xlane.xlu0 %427
    %v429 = vsel %vm97, %v385, 0.0
    %430 = vadd.xlane.f32.xlu0 %v429
    %v431 = vpop.xlane.xlu0 %430
    %v432 = vsel %vm97, %v386, 0.0
    %433 = vadd.xlane.f32.xlu0 %v432
    %v434 = vpop.xlane.xlu0 %433
    %v435 = vsel %vm97, %v387, 0.0
    %436 = vadd.xlane.f32.xlu0 %v435
    %v437 = vpop.xlane.xlu0 %436
    %v438 = vsel %vm97, %v388, 0.0
    %439 = vadd.xlane.f32.xlu0 %v438
    %v440 = vpop.xlane.xlu0 %439
    %v441 = vsel %vm97, %v389, 0.0
    %442 = vadd.xlane.f32.xlu0 %v441
    %v443 = vpop.xlane.xlu0 %442
    %v444 = vsel %vm97, %v390, 0.0
    %445 = vadd.xlane.f32.xlu0 %v444
    %v446 = vpop.xlane.xlu0 %445
    %v447 = vsel %vm97, %v391, 0.0
    %448 = vadd.xlane.f32.xlu0 %v447
    %v449 = vpop.xlane.xlu0 %448
    %v450 = vsel %vm97, %v392, 0.0
    %451 = vadd.xlane.f32.xlu0 %v450
    %v452 = vpop.xlane.xlu0 %451
    %v453 = vsel %vm97, %v393, 0.0
    %454 = vadd.xlane.f32.xlu0 %v453
    %v455 = vpop.xlane.xlu0 %454
    %v456 = vsel %vm97, %v394, 0.0
    %457 = vadd.xlane.f32.xlu0 %v456
    %v458 = vpop.xlane.xlu0 %457
    %v459 = vsel %vm97, %v395, 0.0
    %460 = vadd.xlane.f32.xlu0 %v459
    %v461 = vpop.xlane.xlu0 %460
    %v462 = vsel %vm97, %v396, 0.0
    %463 = vadd.xlane.f32.xlu0 %v462
    %v464 = vpop.xlane.xlu0 %463
    %v465 = vsel %vm97, %v397, 0.0
    %466 = vadd.xlane.f32.xlu0 %v465
    %v467 = vpop.xlane.xlu0 %466
    %v468 = vsel %vm97, %v398, 0.0
    %469 = vadd.xlane.f32.xlu0 %v468
    %v470 = vpop.xlane.xlu0 %469
    %v471 = vsel %vm97, %v399, 0.0
    %472 = vadd.xlane.f32.xlu0 %v471
    %v473 = vpop.xlane.xlu0 %472
    %v474 = vsel %vm97, %v400, 0.0
    %475 = vadd.xlane.f32.xlu0 %v474
    %v476 = vpop.xlane.xlu0 %475
    %v477 = vsel %vm97, %v401, 0.0
    %478 = vadd.xlane.f32.xlu0 %v477
    %v479 = vpop.xlane.xlu0 %478
    %v480 = vsel %vm97, %v402, 0.0
    %481 = vadd.xlane.f32.xlu0 %v480
    %v482 = vpop.xlane.xlu0 %481
    %v483 = vsel %vm97, %v403, 0.0
    %484 = vadd.xlane.f32.xlu0 %v483
    %v485 = vpop.xlane.xlu0 %484
    %v486 = vsel %vm97, %v404, 0.0
    %487 = vadd.xlane.f32.xlu0 %v486
    %v488 = vpop.xlane.xlu0 %487
    %v489 = vsel %vm97, %v405, 0.0
    %490 = vadd.xlane.f32.xlu0 %v489
    %v491 = vpop.xlane.xlu0 %490
    %v492 = vsel %vm97, %v406, 0.0
    %493 = vadd.xlane.f32.xlu0 %v492
    %v494 = vpop.xlane.xlu0 %493
    %v495 = vsel %vm97, %v407, 0.0
    %496 = vadd.xlane.f32.xlu0 %v495
    %v497 = vpop.xlane.xlu0 %496
    %v498 = vsel %vm97, %v408, 0.0
    %499 = vadd.xlane.f32.xlu0 %v498
    %v500 = vpop.xlane.xlu0 %499
    %v501 = vsel %vm97, %v409, 0.0
    %502 = vadd.xlane.f32.xlu0 %v501
    %v503 = vpop.xlane.xlu0 %502
    %v504 = vsel %vm97, %v410, 0.0
    %505 = vadd.xlane.f32.xlu0 %v504
    %v506 = vpop.xlane.xlu0 %505
    %v539 = vperm.slane %v413, %v67
    %v540 = vadd.s32 %v67, 4294967288
    %v541 = vperm.slane %v416, %v540
    %vm542 = vcmask 130112
    %v543 = vsel %vm542, %v541, %v539
    %v544 = vadd.s32 %v67, 4294967280
    %v545 = vperm.slane %v419, %v544
    %vm546 = vcmask 195712
    %v547 = vsel %vm546, %v545, %v543
    %v548 = vadd.s32 %v67, 4294967272
    %v549 = vperm.slane %v422, %v548
    %vm550 = vcmask 261312
    %v551 = vsel %vm550, %v549, %v547
    %v552 = vadd.s32 %v67, 4294967264
    %v553 = vperm.slane %v425, %v552
    %vm554 = vcmask 326912
    %v555 = vsel %vm554, %v553, %v551
    %v556 = vadd.s32 %v67, 4294967256
    %v557 = vperm.slane %v428, %v556
    %vm558 = vcmask 392512
    %v559 = vsel %vm558, %v557, %v555
    %v560 = vadd.s32 %v67, 4294967248
    %v561 = vperm.slane %v431, %v560
    %vm562 = vcmask 458112
    %v563 = vsel %vm562, %v561, %v559
    %v564 = vadd.s32 %v67, 4294967240
    %v565 = vperm.slane %v434, %v564
    %vm566 = vcmask 523712
    %v567 = vsel %vm566, %v565, %v563
    %v568 = vperm.slane %v437, %v67
    %v569 = vperm.slane %v440, %v540
    %v570 = vsel %vm542, %v569, %v568
    %v571 = vperm.slane %v443, %v544
    %v572 = vsel %vm546, %v571, %v570
    %v573 = vperm.slane %v446, %v548
    %v574 = vsel %vm550, %v573, %v572
    %v575 = vperm.slane %v449, %v552
    %v576 = vsel %vm554, %v575, %v574
    %v577 = vperm.slane %v452, %v556
    %v578 = vsel %vm558, %v577, %v576
    %v579 = vperm.slane %v455, %v560
    %v580 = vsel %vm562, %v579, %v578
    %v581 = vperm.slane %v458, %v564
    %v582 = vsel %vm566, %v581, %v580
    %v583 = vperm.slane %v461, %v67
    %v584 = vperm.slane %v464, %v540
    %v585 = vsel %vm542, %v584, %v583
    %v586 = vperm.slane %v467, %v544
    %v587 = vsel %vm546, %v586, %v585
    %v588 = vperm.slane %v470, %v548
    %v589 = vsel %vm550, %v588, %v587
    %v590 = vperm.slane %v473, %v552
    %v591 = vsel %vm554, %v590, %v589
    %v592 = vperm.slane %v476, %v556
    %v593 = vsel %vm558, %v592, %v591
    %v594 = vperm.slane %v479, %v560
    %v595 = vsel %vm562, %v594, %v593
    %v596 = vperm.slane %v482, %v564
    %v597 = vsel %vm566, %v596, %v595
    %v598 = vperm.slane %v485, %v67
    %v599 = vperm.slane %v488, %v540
    %v600 = vsel %vm542, %v599, %v598
    %v601 = vperm.slane %v491, %v544
    %v602 = vsel %vm546, %v601, %v600
    %v603 = vperm.slane %v494, %v548
    %v604 = vsel %vm550, %v603, %v602
    %v605 = vperm.slane %v497, %v552
    %v606 = vsel %vm554, %v605, %v604
    %v607 = vperm.slane %v500, %v556
    %v608 = vsel %vm558, %v607, %v606
    %v609 = vperm.slane %v503, %v560
    %v610 = vsel %vm562, %v609, %v608
    %v611 = vperm.slane %v506, %v564
    %v612 = vsel %vm566, %v611, %v610
    %vm613 = vcmask 1041409
    %v614 = vsel %vm613, %v582, %v567
    %vm615 = vcmask 1042434
    %v616 = vsel %vm615, %v597, %v614
    %vm617 = vcmask 1043459
    %v618 = vsel %vm617, %v612, %v616
    %vm620 = vcmask 519168
    %v621 = vsel %vm620, %v618, 0.0
    %622 = vadd.xlane.f32.xlu0 %v621
    %v623 = vpop.xlane.xlu0 %622
    %v624 = vmax.f32 %v623, 0.0
    %v625 = vrsqrt.pop %v624
    %v626 = vmul.f32 %v625, %v624
    %v627 = vmul.f32 %v626, %v625
    %v628 = vmul.f32 0.5, %v627
    %v629 = vsub.f32 1.5, %v628
    %v630 = vmul.f32 %v625, %v629
    %v631 = vmul.f32 %v624, %v630
    %vm632 = vcmp.eq.f32.partialorder %v624, inf
    %v633 = vsel %vm632, %v624, %v631
    %vm634 = vcmp.eq.f32.partialorder %v624, 0.0
    %v635 = vand.u32 %v624, 2147483648
    %v636 = vsel %vm634, %v635, %v633
    %v637 = vsub.f32 0.0, %v76
    %v638 = vmul.f32 %v636, 0.001
    %v639 = vadd.f32 %v637, %v638
    %vm640 = vcmask 1043456
    %v641 = vsel %vm640, %v639, 0.0
    %v642 = vrot.slane %v641, 4
    %v643 = vadd.f32 %v641, %v642
    %v644 = vrot.slane %v643, 2
    %v645 = vadd.f32 %v643, %v644
    %v646 = vrot.slane %v645, 1
    %v647 = vadd.f32 %v645, %v646
    %648 = vst [vmem:[#allocation5] sm:$0xff] %v647
    // Predicated region
    $region18: #{tpu_custom_call.1} parent=1 // pred_check
      _
    $region19: #{tpu_custom_call.1} parent=1 // pred_check_branch
      %650 = sbr.rel (0) target = $region21
    $region20: #{tpu_custom_call.1} parent=1 // pred_region
      %652 = vsyncadd [#allocation4], 0
      %s654 = sshll.u32 [#allocation5], 4
      %s655 = int_to_ptr.vmem [resolvable:$true] %s654
      %s656 = sshll.u32 %s3, 4
      %s657 = int_to_ptr.hbm [resolvable:$true] %s656
      %659 = dma.vmem_to_hbm [thread:$0]  %s655, 128, %s657, [#allocation4]
    $region21: #{tpu_custom_call.1} parent=1 // pred_fallthru
      _
    // Predicated region
    $region22: #{tpu_custom_call.1} parent=1 // pred_check
      _
    $region23: #{tpu_custom_call.1} parent=1 // pred_check_branch
      %661 = sbr.rel (0) target = $region25
    $region24: #{tpu_custom_call.1} parent=1 // pred_region
      %663 = dma.done [#allocation4], 128
    $region25: #{tpu_custom_call.1} parent=1 // pred_fallthru
      _
    %664 = vsyncpa [#allocation3], 1
    %665 = vsyncpa [#allocation4], 1

</llo_original>
